<compile_context>
chip_gen: v7x
topology: tpu7x:2x2x1
jax: 0.10.0
libtpu: 0.0.40
codegen_flags: <defaults>
</compile_context>

<pallas_src>
import functools

import jax
import jax.numpy as jnp
from jax.experimental import pallas as pl
from jax.experimental.pallas import tpu as pltpu


def _attention_pooling_kernel(x_ref, w_ref, o_ref, m_sc, l_sc, acc_sc, *,
                              seq_len, block_l):
    """One grid step: a (bt, lt, D) slab of `bt` sequences x `lt` positions.

    Grid is (batch blocks, L blocks) with the L axis innermost ("arbitrary").
    Online-softmax state lives in VMEM scratch:
      m_sc   (bt, 1)  running max of the scores
      l_sc   (bt, 1)  running sum of exp(score - max)
      acc_sc (bt, D)  running unnormalized weighted sum (f32)
    """
    li = pl.program_id(1)

    @pl.when(li == 0)
    def _init():
        m_sc[...] = jnp.full_like(m_sc, -jnp.inf)
        l_sc[...] = jnp.zeros_like(l_sc)
        acc_sc[...] = jnp.zeros_like(acc_sc)

    x = x_ref[...]                                   # (bt, lt, D), native dtype
    w = w_ref[...]                                   # (1, 1, D)

    # Mask sequence positions past the true length (only emitted when block_l
    # does not divide L).  x is zeroed too so stale data in the padded tail of
    # the block cannot leak NaN/Inf into the weighted sum of valid rows.
    masked = seq_len % block_l != 0
    if masked:
        valid = seq_len - li * block_l               # scalar; >= lt except last step
        pos_x = jax.lax.broadcasted_iota(jnp.int32, x.shape, 1)
        x = jnp.where(pos_x < valid, x, jnp.zeros_like(x))

    # Score projection on the VPU: multiply by the weight row (implicit
    # broadcast, no bt-wide weight copy) and lane-reduce over D with f32
    # accumulation.  Replaces bt M=1 MXU matmuls and avoids the
    # rhs-contracting-last-dim (L, D)->(D, L) relayout hazard of the old
    # batched score einsum.
    prod = x * w                                     # (bt, lt, D)
    if prod.dtype != jnp.float32:
        prod = prod.astype(jnp.float32)
    s = jnp.sum(prod, axis=-1)                       # (bt, lt) f32 scores

    if masked:
        pos_s = jax.lax.broadcasted_iota(jnp.int32, s.shape, 1)
        s = jnp.where(pos_s < valid, s, -jnp.inf)

    # Online softmax over the sequence axis (lane reductions).
    m_prev = m_sc[...]                               # (bt, 1)
    m_new = jnp.maximum(m_prev, jnp.max(s, axis=-1, keepdims=True))
    alpha = jnp.exp(m_prev - m_new)                  # (bt, 1) rescale of old state
    e = jnp.exp(s - m_new)                           # (bt, lt) unnormalized weights
    l_sc[...] = alpha * l_sc[...] + jnp.sum(e, axis=-1, keepdims=True)
    m_sc[...] = m_new

    # Weighted sum over this L block on the MXU (f32 accumulation).  The rhs
    # contracts over its second-to-last axis, so x needs no relayout; the
    # (bt, lt) -> (bt, 1, lt) expand and the [:, 0, :] squeeze are O(bt*lt) /
    # O(bt*D) relayouts, negligible next to the (bt, lt, D) data volume.
    # TODO(synk): on v5e with tiny L*D a pure-VPU multiply + sublane-reduce
    # path would avoid the bt M=1 MXU dispatches entirely.
    part = jnp.einsum("bkl,bld->bkd", e[:, None, :].astype(x.dtype), x,
                      preferred_element_type=jnp.float32)[:, 0, :]   # (bt, D)
    acc_sc[...] = alpha * acc_sc[...] + part

    @pl.when(li == pl.num_programs(1) - 1)
    def _finalize():
        # One EUP reciprocal + (bt, D) multiplies instead of (bt, L) VALU
        # divides on the softmax weights.
        inv = pl.reciprocal(l_sc[...], approx=True)  # (bt, 1)
        o_ref[...] = (acc_sc[...] * inv).astype(o_ref.dtype)


def _vmem_limit_bytes():
    """Pipeline VMEM limit (v5e/v6e: 128 MiB physical, v7x: 64 MiB)."""
    cap = 64 * 1024 * 1024                           # conservative fallback (v7x)
    try:
        cap = int(pltpu.get_tpu_info().vmem_capacity_bytes)
    except Exception:
        pass
    return min((3 * cap) // 4, 96 * 1024 * 1024)


_HEADROOM_BYTES = 6 * 1024 * 1024        # compiler-internal scratch headroom
_MAX_BLOCK_BYTES = 16 * 1024 * 1024      # per input pipeline buffer (DMA knee)


def _choose_blocks(B, L, D, itemsize, budget):
    """Pick (bt, lt): batch rows and sequence positions per grid step.

    VMEM model: double-buffered input block + in-body block-sized temporaries
    (masked copy / weighted product, f32 upcast) + f32 softmax state + the
    double-buffered output block.  bt is only ever rounded DOWN (never past
    the budget); lt is a multiple of 8 or the full L.
    """

    def per_row(lt):
        elem = lt * D
        return (2 * elem * itemsize                  # x block, double-buffered
                + 2 * elem * itemsize                # x value + x*w product temps
                + (elem * 4 if itemsize < 4 else 0)  # f32 upcast of the product
                + 16 * lt                            # f32 score / e rows
                + (D + 2) * 4                        # acc / m / l scratch
                + 2 * D * itemsize)                  # output block, double-buffered

    fixed = 2 * D * itemsize                         # shared weight row
    row_bytes = L * D * itemsize                     # one full sequence, one buffer

    # ---- single-pass path: full L per step --------------------------------
    bt = min(B,
             max(0, (budget - fixed) // per_row(L)),
             max(1, _MAX_BLOCK_BYTES // max(row_bytes, 1)))
    if bt >= min(B, 8) and row_bytes <= _MAX_BLOCK_BYTES:
        lt = L
        if bt >= B:
            bt = B
            if B >= 16:
                # Keep >= 2 grid steps: both v7x TensorCores get work and the
                # pipeline can prefetch block i+1 while computing block i.
                half = (((B + 1) // 2 + 7) // 8) * 8
                if half < B:
                    bt = half
        else:
            bt = (bt // 8) * 8                       # round DOWN only
    else:
        # ---- L-tiled path: online softmax over an inner "arbitrary" axis --
        bt = B if B < 8 else 8
        state = (D + 2) * 4 + 2 * D * itemsize
        per_pos = 4 * D * itemsize + (4 * D if itemsize < 4 else 0) + 16
        lt = max(0, budget - fixed - bt * state) // max(bt * per_pos, 1)
        lt = min(lt, L, max(8, _MAX_BLOCK_BYTES // max(bt * D * itemsize, 1)))
        lt = min(L, max(8, (lt // 8) * 8))

    # Defensive re-check: never exceed the budget after rounding (review #1).
    while bt > 1 and fixed + bt * per_row(lt) > budget:
        bt = bt - 8 if bt > 8 else bt - 1
    return max(bt, 1), lt


def attention_pooling(x, w, b=None, *, block_b=None, block_l=None):
    """Pallas TPU forward for AttentionPooling.

    x: (B, L, D); w: Linear(D, 1) weight, shape (D,) or (1, D); b: (1,) bias.
    The bias shifts every score by the same constant, which softmax cancels,
    so it is accepted for API parity but never enters the kernel.
    block_b / block_l override the automatic block sizing (testing / tuning);
    block_l should be a multiple of 8 (or equal to L).
    """
    del b  # softmax shift invariance
    B, L, D = x.shape
    w3 = jnp.reshape(jnp.asarray(w), (1, 1, D)).astype(x.dtype)

    itemsize = jnp.dtype(x.dtype).itemsize
    vmem_limit = _vmem_limit_bytes()
    budget = max(vmem_limit - _HEADROOM_BYTES, vmem_limit // 2)
    bt, lt = _choose_blocks(B, L, D, itemsize, budget)
    if block_b is not None:
        bt = max(1, min(block_b, B))
    if block_l is not None:
        lt = max(1, min(block_l, L))
    grid = (pl.cdiv(B, bt), pl.cdiv(L, lt))

    kernel = functools.partial(_attention_pooling_kernel, seq_len=L, block_l=lt)

    # Scheduling hint for XLA: ~2 flops each for the score dot and the
    # weighted sum per input element; one exp per (b, l) score; x read once.
    cost = pl.CostEstimate(
        flops=4 * B * L * D,
        transcendentals=B * L,
        bytes_accessed=B * L * D * itemsize + B * D * itemsize + D * itemsize,
    )

    return pl.pallas_call(
        kernel,
        out_shape=jax.ShapeDtypeStruct((B, D), x.dtype),
        grid=grid,
        in_specs=[
            pl.BlockSpec((bt, lt, D), lambda i, l: (i, l, 0)),   # streamed x slab
            pl.BlockSpec((1, 1, D), lambda i, l: (0, 0, 0)),     # resident weight row
        ],
        out_specs=pl.BlockSpec((bt, D), lambda i, l: (i, 0)),    # lane-dense (bt, D)
        scratch_shapes=[
            pltpu.VMEM((bt, 1), jnp.float32),    # running max
            pltpu.VMEM((bt, 1), jnp.float32),    # running sum of exp
            pltpu.VMEM((bt, D), jnp.float32),    # unnormalized weighted sum
        ],
        compiler_params=pltpu.CompilerParams(
            dimension_semantics=("parallel", "arbitrary"),
            vmem_limit_bytes=vmem_limit,
        ),
        cost_estimate=cost,
    )(x, w3)


def attention_pooling_ref(x, w, b):
    w_row = jnp.reshape(jnp.asarray(w), (1, -1))                 # (1, D)
    scores = jnp.einsum("bld,kd->blk", x, w_row) + b             # (B, L, 1)
    weights = jax.nn.softmax(scores, axis=1)
    return jnp.sum(x * weights, axis=1)                          # (B, D)


if __name__ == "__main__":
    key = jax.random.PRNGKey(0)
    kx, kw, kb, kx2 = jax.random.split(key, 4)

    # Deterministic Linear(D, 1)-shaped parameters (synthetic, not a checkpoint).
    B, L, D = 2, 8, 32
    x = jax.random.normal(kx, (B, L, D), dtype=jnp.float32)
    w = jax.random.normal(kw, (1, D), dtype=jnp.float32) * 0.1
    b = jax.random.normal(kb, (1,), dtype=jnp.float32) * 0.1

    # --- primary small-shape check, automatic block sizing -----------------
    out = attention_pooling(x, w, b)
    jax.block_until_ready(out)
    ref = attention_pooling_ref(x, w, b)
    assert out.shape == (B, D)
    # Tolerance covers the EUP approximate reciprocal used for the softmax
    # normalization (and, on bf16 inputs, the bf16 cast of the weights fed to
    # the second MXU matmul -- flash-attention-style precision).
    assert jnp.allclose(out, ref, atol=5e-3, rtol=5e-3), (
        f"max abs err {jnp.max(jnp.abs(out - ref))}")

    # --- online-softmax / masking / partial-batch-block check --------------
    # Forces L-tiling (block_l=16 over L=40 -> 3 L steps, last one masked) and
    # a partial final batch block (B=12 with block_b=8), exercising the
    # accumulator init/finalize, the sequence mask, and padded-row discard.
    B2, L2, D2 = 12, 40, 32
    x2 = jax.random.normal(kx2, (B2, L2, D2), dtype=jnp.float32)
    out2 = attention_pooling(x2, w, b, block_b=8, block_l=16)
    jax.block_until_ready(out2)
    ref2 = attention_pooling_ref(x2, w, b)
    assert out2.shape == (B2, D2)
    assert jnp.allclose(out2, ref2, atol=5e-3, rtol=5e-3), (
        f"max abs err {jnp.max(jnp.abs(out2 - ref2))}")

    print("KERNEL_OK")
</pallas_src>

<mosaic_0001>
module attributes {stable_mosaic.version = 11 : i64} {
  func.func @_attention_pooling_kernel(%arg0: i32, %arg1: i32, %arg2: memref<2x8x32xf32, #tpu.memory_space<vmem>>, %arg3: memref<1x1x32xf32, #tpu.memory_space<vmem>>, %arg4: memref<2x32xf32, #tpu.memory_space<vmem>>, %arg5: memref<2x1xf32, #tpu.memory_space<vmem>>, %arg6: memref<2x1xf32, #tpu.memory_space<vmem>>, %arg7: memref<2x32xf32, #tpu.memory_space<vmem>>) attributes {dimension_semantics = [#tpu.dimension_semantics<parallel>, #tpu.dimension_semantics<arbitrary>], iteration_bounds = array<i64: 1, 1>, scalar_prefetch = 0 : i64, scratch_operands = 3 : i64, tpu.core_type = #tpu.core_type<tc>, window_params = [{transform_indices = @transform_0, window_bounds = array<i64: 2, 8, 32>}, {pipeline_mode = #tpu.pipeline_mode<synchronous>, transform_indices = @transform_1, window_bounds = array<i64: 1, 1, 32>}, {transform_indices = @transform_2, window_bounds = array<i64: 2, 32>}]} {
    %c0_i32 = arith.constant 0 : i32
    %0 = arith.cmpi eq, %arg1, %c0_i32 : i32
    %1 = arith.extui %0 : i1 to i32
    %c0_i32_0 = arith.constant 0 : i32
    %2 = arith.cmpi ne, %1, %c0_i32_0 : i32
    scf.if %2 {
      %cst_23 = arith.constant 0xFF800000 : f32
      %35 = vector.broadcast %cst_23 : f32 to vector<2x1xf32>
      %c0_24 = arith.constant 0 : index
      %c0_25 = arith.constant 0 : index
      %36 = vector.load %arg5[%c0_24, %c0_25] : memref<2x1xf32, #tpu.memory_space<vmem>>, vector<2x1xf32>
      tpu.vector_store %arg5[%c0_24, %c0_25], %35 {strides = array<i32>} : memref<2x1xf32, #tpu.memory_space<vmem>>, vector<2x1xf32>,
      %cst_26 = arith.constant 0.000000e+00 : f32
      %37 = vector.broadcast %cst_26 : f32 to vector<2x1xf32>
      %c0_27 = arith.constant 0 : index
      %c0_28 = arith.constant 0 : index
      %38 = vector.load %arg6[%c0_27, %c0_28] : memref<2x1xf32, #tpu.memory_space<vmem>>, vector<2x1xf32>
      tpu.vector_store %arg6[%c0_27, %c0_28], %37 {strides = array<i32>} : memref<2x1xf32, #tpu.memory_space<vmem>>, vector<2x1xf32>,
      %cst_29 = arith.constant 0.000000e+00 : f32
      %39 = vector.broadcast %cst_29 : f32 to vector<2x32xf32>
      %c0_30 = arith.constant 0 : index
      %c0_31 = arith.constant 0 : index
      %40 = vector.load %arg7[%c0_30, %c0_31] : memref<2x32xf32, #tpu.memory_space<vmem>>, vector<2x32xf32>
      tpu.vector_store %arg7[%c0_30, %c0_31], %39 {strides = array<i32>} : memref<2x32xf32, #tpu.memory_space<vmem>>, vector<2x32xf32>,
    } else {
    }
    %c0 = arith.constant 0 : index
    %c0_1 = arith.constant 0 : index
    %c0_2 = arith.constant 0 : index
    %3 = vector.load %arg2[%c0, %c0_1, %c0_2] : memref<2x8x32xf32, #tpu.memory_space<vmem>>, vector<2x8x32xf32>
    %c0_3 = arith.constant 0 : index
    %c0_4 = arith.constant 0 : index
    %c0_5 = arith.constant 0 : index
    %4 = vector.load %arg3[%c0_3, %c0_4, %c0_5] : memref<1x1x32xf32, #tpu.memory_space<vmem>>, vector<1x1x32xf32>
    %5 = vector.broadcast %4 : vector<1x1x32xf32> to vector<2x8x32xf32>
    %6 = arith.mulf %3, %5 : vector<2x8x32xf32>
    %cst = arith.constant dense<0.000000e+00> : vector<2x8xf32>
    %7 = vector.multi_reduction <add>, %6, %cst [2] : vector<2x8x32xf32> to vector<2x8xf32>
    %c0_6 = arith.constant 0 : index
    %c0_7 = arith.constant 0 : index
    %8 = vector.load %arg5[%c0_6, %c0_7] : memref<2x1xf32, #tpu.memory_space<vmem>>, vector<2x1xf32>
    %cst_8 = arith.constant dense<0xFF800000> : vector<2xf32>
    %9 = vector.multi_reduction <maximumf>, %7, %cst_8 [1] : vector<2x8xf32> to vector<2xf32>
    %10 = vector.shape_cast %9 : vector<2xf32> to vector<2x1xf32>
    %11 = arith.maximumf %8, %10 : vector<2x1xf32>
    %12 = arith.subf %8, %11 : vector<2x1xf32>
    %13 = math.exp %12 : vector<2x1xf32>
    %14 = vector.broadcast %11 : vector<2x1xf32> to vector<2x8xf32>
    %15 = arith.subf %7, %14 : vector<2x8xf32>
    %16 = math.exp %15 : vector<2x8xf32>
    %c0_9 = arith.constant 0 : index
    %c0_10 = arith.constant 0 : index
    %17 = vector.load %arg6[%c0_9, %c0_10] : memref<2x1xf32, #tpu.memory_space<vmem>>, vector<2x1xf32>
    %18 = arith.mulf %13, %17 : vector<2x1xf32>
    %cst_11 = arith.constant dense<0.000000e+00> : vector<2xf32>
    %19 = vector.multi_reduction <add>, %16, %cst_11 [1] : vector<2x8xf32> to vector<2xf32>
    %20 = vector.shape_cast %19 : vector<2xf32> to vector<2x1xf32>
    %21 = arith.addf %18, %20 : vector<2x1xf32>
    %c0_12 = arith.constant 0 : index
    %c0_13 = arith.constant 0 : index
    %22 = vector.load %arg6[%c0_12, %c0_13] : memref<2x1xf32, #tpu.memory_space<vmem>>, vector<2x1xf32>
    tpu.vector_store %arg6[%c0_12, %c0_13], %21 {strides = array<i32>} : memref<2x1xf32, #tpu.memory_space<vmem>>, vector<2x1xf32>,
    %c0_14 = arith.constant 0 : index
    %c0_15 = arith.constant 0 : index
    %23 = vector.load %arg5[%c0_14, %c0_15] : memref<2x1xf32, #tpu.memory_space<vmem>>, vector<2x1xf32>
    tpu.vector_store %arg5[%c0_14, %c0_15], %11 {strides = array<i32>} : memref<2x1xf32, #tpu.memory_space<vmem>>, vector<2x1xf32>,
    %24 = vector.shape_cast %16 : vector<2x8xf32> to vector<2x1x8xf32>
    "tpu.trace_start"() <{level = 10 : i32, message = "bkl,bld->bkd"}> : () -> ()
    %cst_16 = arith.constant dense<0.000000e+00> : vector<2x1x32xf32>
    %25 = tpu.matmul %24, %3, %cst_16 {dimension_numbers = #tpu.dot_dimension_numbers<[2], [1], [1], [2], [0, 0, 0, 1, 1, 2], [0], [0]>} : vector<2x1x8xf32>, vector<2x8x32xf32>, vector<2x1x32xf32> -> vector<2x1x32xf32>
    "tpu.trace_stop"() : () -> ()
    %26 = vector.shape_cast %25 : vector<2x1x32xf32> to vector<2x32xf32>
    %c0_17 = arith.constant 0 : index
    %c0_18 = arith.constant 0 : index
    %27 = vector.load %arg7[%c0_17, %c0_18] : memref<2x32xf32, #tpu.memory_space<vmem>>, vector<2x32xf32>
    %28 = vector.broadcast %13 : vector<2x1xf32> to vector<2x32xf32>
    %29 = arith.mulf %28, %27 : vector<2x32xf32>
    %30 = arith.addf %29, %26 : vector<2x32xf32>
    %c0_19 = arith.constant 0 : index
    %c0_20 = arith.constant 0 : index
    %31 = vector.load %arg7[%c0_19, %c0_20] : memref<2x32xf32, #tpu.memory_space<vmem>>, vector<2x32xf32>
    tpu.vector_store %arg7[%c0_19, %c0_20], %30 {strides = array<i32>} : memref<2x32xf32, #tpu.memory_space<vmem>>, vector<2x32xf32>,
    %c0_i32_21 = arith.constant 0 : i32
    %32 = arith.cmpi eq, %arg1, %c0_i32_21 : i32
    %33 = arith.extui %32 : i1 to i32
    %c0_i32_22 = arith.constant 0 : i32
    %34 = arith.cmpi ne, %33, %c0_i32_22 : i32
    scf.if %34 {
      %c0_23 = arith.constant 0 : index
      %c0_24 = arith.constant 0 : index
      %35 = vector.load %arg6[%c0_23, %c0_24] : memref<2x1xf32, #tpu.memory_space<vmem>>, vector<2x1xf32>
      %36 = tpu.reciprocal %35 {approx = true} : vector<2x1xf32> -> vector<2x1xf32>
      %c0_25 = arith.constant 0 : index
      %c0_26 = arith.constant 0 : index
      %37 = vector.load %arg7[%c0_25, %c0_26] : memref<2x32xf32, #tpu.memory_space<vmem>>, vector<2x32xf32>
      %38 = vector.broadcast %36 : vector<2x1xf32> to vector<2x32xf32>
      %39 = arith.mulf %37, %38 : vector<2x32xf32>
      %c0_27 = arith.constant 0 : index
      %c0_28 = arith.constant 0 : index
      %40 = vector.load %arg4[%c0_27, %c0_28] : memref<2x32xf32, #tpu.memory_space<vmem>>, vector<2x32xf32>
      tpu.vector_store %arg4[%c0_27, %c0_28], %39 {strides = array<i32>} : memref<2x32xf32, #tpu.memory_space<vmem>>, vector<2x32xf32>,
    } else {
    }
    return
  }
  func.func @transform_0(%arg0: i32, %arg1: i32) -> (i32, i32, i32) {
    %c0_i32 = arith.constant 0 : i32
    %c0_i32_0 = arith.constant 0 : i32
    return %arg0, %arg1, %c0_i32 : i32, i32, i32
  }
  func.func @transform_1(%arg0: i32, %arg1: i32) -> (i32, i32, i32) {
    %c0_i32 = arith.constant 0 : i32
    %c0_i32_0 = arith.constant 0 : i32
    %c0_i32_1 = arith.constant 0 : i32
    %c0_i32_2 = arith.constant 0 : i32
    return %c0_i32, %c0_i32_0, %c0_i32_1 : i32, i32, i32
  }
  func.func @transform_2(%arg0: i32, %arg1: i32) -> (i32, i32) {
    %c0_i32 = arith.constant 0 : i32
    %c0_i32_0 = arith.constant 0 : i32
    return %arg0, %c0_i32 : i32, i32
  }
}

</mosaic_0001>

<llo_original>
// kernel: tpu_custom_call.1
$region0: #{tpu_custom_call.1}
  #allocation0 [shape = 'u32[]', space=smem, size = 0x4, offset = 0x4, fixed_abs, tag = 'smem constant byte address 0x4 - core index']
  #allocation1 [shape = 'u32[144,128]{1,0:T(1,128)}', space=vmem, size = 0x12000, scoped, tag = 'internal scratch']
  #allocation2 [shape = 'f32[2,1]{1,0:T(2,128)}', space=vmem, size = 0x400, scoped, tag = 'scratch operand']
  #allocation3 [shape = 'f32[2,1]{1,0:T(2,128)}', space=vmem, size = 0x400, scoped, tag = 'scratch operand']
  #allocation4 [shape = 'f32[2,32]{1,0:T(2,128)}', space=vmem, size = 0x400, scoped, tag = 'scratch operand']
  %s0 = inlined_call_operand.hbm [shape: f32[2,8,32], index: 0, kind: input, shape index: {}]
  %s1 = inlined_call_operand.vmem [shape: f32[1,1,32], index: 1, kind: input, shape index: {}]
  %s2 = inlined_call_operand.hbm [shape: f32[2,32], index: 2, kind: output, shape index: {}]
  %s3 = sld [smem:[#allocation0]]
  $region30: #{tpu_custom_call.1} parent=0
    _
  %s5 = ssub.s32 1, %s3
  %s6 = scalar_select 0, %s5, %s3
  $region1: #{tpu_custom_call.1} parent=0
    #allocation5 [shape = 'u8[8192]{0}', space=vmem, size = 0x2000, scoped, tag = 'input window, operand 0, single buffered']
    #allocation6 [shape = 's32[1]{0}', space=sflag, size = 0x4, scoped, tag = 'scoped memory for tpu_custom_call.1']
    #allocation7 [shape = 's32[1]{0}', space=sflag, size = 0x4, scoped, tag = 'scoped memory for tpu_custom_call.1']
    #allocation8 [shape = 'u8[1024]{0}', space=vmem, size = 0x400, scoped, tag = 'output window, operand 0, single buffered']
    %7 = vsyncpa [#allocation6], 0
    %8 = vsyncpa [#allocation7], 0
    // Predicated region
    $region2: #{tpu_custom_call.1} parent=1 // pred_check
      _
    $region3: #{tpu_custom_call.1} parent=1 // pred_check_branch
      %10 = sbr.rel (0) target = $region5
    $region4: #{tpu_custom_call.1} parent=1 // pred_region
      %s12 = ssub.s32 256, 256
      %13 = vsyncadd [#allocation6], %s12
      %s14 = sshll.u32 [#allocation5], 4
      %s15 = int_to_ptr.vmem [resolvable:$true] %s14
      %20 = dma.hbm_to_vmem [thread:$0]  %s0, 256, %s15, [#allocation6], 128, 128, 8
    $region5: #{tpu_custom_call.1} parent=1 // pred_fallthru
      _
    // Predicated region
    $region6: #{tpu_custom_call.1} parent=1 // pred_check
      _
    $region7: #{tpu_custom_call.1} parent=1 // pred_check_branch
      %22 = sbr.rel (0) target = $region9
    $region8: #{tpu_custom_call.1} parent=1 // pred_region
      _
    $region9: #{tpu_custom_call.1} parent=1 // pred_fallthru
      _
    // Predicated region
    $region10: #{tpu_custom_call.1} parent=1 // pred_check
      _
    $region11: #{tpu_custom_call.1} parent=1 // pred_check_branch
      %24 = sbr.rel (0) target = $region13
    $region12: #{tpu_custom_call.1} parent=1 // pred_region
      %25 = dma.done [#allocation6], 256
    $region13: #{tpu_custom_call.1} parent=1 // pred_fallthru
      _
    %p26 = scmp.eq.s32.totalorder 0, 0
    // Predicated region
    $region14: #{tpu_custom_call.1} parent=1 // pred_check
      %p27 = pneg %p26
    $region15: #{tpu_custom_call.1} parent=1 // pred_check_branch
      %29 = sbr.rel (%p27) target = $region17
    $region16: #{tpu_custom_call.1} parent=1 // pred_region
      %vm30 = vcmask 1024
      %31 = vst.msk [vmem:[#allocation2] sm:$0x3] %vm30, -inf
      %32 = vst.msk [vmem:[#allocation3] sm:$0x3] %vm30, 0.0
      %vm33 = vcmask 254976
      %34 = vst.msk [vmem:[#allocation4] sm:$0x3] %vm33, 0.0
    $region17: #{tpu_custom_call.1} parent=1 // pred_fallthru
      _
    %v35 = vld [vmem:[#allocation5] sm:$0xff]
    %v36 = vld [vmem:[#allocation5 + $0x8] sm:$0xff]
    %v37 = vld [vmem:[%s1] sm:$0x1]
    %v39 = vlaneseq
    %v40 = vshrl.u32 %v39, 7
    %v41 = vsub.s32 0, %v40
    %v42 = vrot.slane %v37, %v41
    %v44 = vmul.f32 %v35, %v42
    %v45 = vmul.f32 %v36, %v42
    %vm46 = vcmask 261120
    %v47 = vsel %vm46, %v44, 0.0
    %48 = vadd.xlane.f32.xlu0 %v47
    %v49 = vpop.xlane.xlu0 %48
    %v50 = vsel %vm46, %v45, 0.0
    %51 = vadd.xlane.f32.xlu0 %v50
    %v52 = vpop.xlane.xlu0 %51
    %v53 = vld [vmem:[#allocation2] sm:$0x3]
    %v56 = vlaneseq
    %v57 = vand.u32 %v56, 127
    %v58 = vlaneseq
    %v59 = vshrl.u32 %v58, 7
    %v60 = vsub.s32 %v57, %v59
    %v61 = vrot.slane %v49, %v60
    %v62 = vlaneseq
    %v63 = vshrl.u32 %v62, 7
    %v64 = vsub.s32 %v57, %v63
    %v65 = vrot.slane %v52, %v64
    %vm66 = vcmask 1041409
    %v67 = vsel %vm66, %v65, %v61
    %vm69 = vcmask 58368
    %v70 = vsel %vm69, %v67, -inf
    %71 = vmax.xlane.f32.xlu0 %v70
    %v72 = vpop.xlane.xlu0 %71
    %v73 = vmax.f32 %v53, %v72
    %v74 = vsub.f32 %v53, %v73
    %v75 = vmul.f32 %v74, 1.442695
    %v76 = vpow.pop %v75
    %78 = vset.pattern.permute.xlu0 0
    %79 = vperm.xlu0 %78, %v73
    %v80 = vpop.permute.xlu0 %79
    %v81 = vlaneseq
    %v82 = vshrl.u32 %v81, 7
    %v83 = vsub.s32 0, %v82
    %v84 = vrot.slane %v80, %v83
    %v85 = vlaneseq
    %v86 = vshrl.u32 %v85, 7
    %v87 = vsub.s32 1, %v86
    %v88 = vrot.slane %v80, %v87
    %v91 = vsub.f32 %v49, %v84
    %v92 = vsub.f32 %v52, %v88
    %v93 = vmul.f32 %v91, 1.442695
    %v94 = vpow.pop %v93
    %v95 = vmul.f32 %v92, 1.442695
    %v96 = vpow.pop %v95
    %v97 = vld [vmem:[#allocation3] sm:$0x3]
    %v98 = vmul.f32 %v76, %v97
    %101 = vset.pattern.permute.xlu0 0
    %102 = vperm.xlu0 %101, %v94
    %v103 = vpop.permute.xlu0 %102
    %104 = vset.pattern.permute.xlu0 0
    %105 = vperm.xlu0 %104, %v96
    %v106 = vpop.permute.xlu0 %105
    %v107 = vlaneseq
    %v108 = vshrl.u32 %v107, 7
    %v109 = vsub.s32 %v57, %v108
    %v110 = vrot.slane %v103, %v109
    %v111 = vlaneseq
    %v112 = vshrl.u32 %v111, 7
    %v113 = vsub.s32 %v57, %v112
    %v114 = vrot.slane %v106, %v113
    %v115 = vsel %vm66, %v114, %v110
    %v117 = vsel %vm69, %v115, 0.0
    %118 = vadd.xlane.f32.xlu0 %v117
    %v119 = vpop.xlane.xlu0 %118
    %v120 = vadd.f32 %v98, %v119
    %vm121 = vcmask 1024
    %122 = vst.msk [vmem:[#allocation3] sm:$0x3] %vm121, %v120
    %123 = vst.msk [vmem:[#allocation2] sm:$0x3] %vm121, %v73
    %vm124 = vcmask 64512
    %v125 = vsel %vm124, %v110, 0
    %127 = vmatprep.subr.mxu0 0.0
    %128 = vmatpush1.msra.mxu0 %v35
    %129 = vmatprep.subr.mxu0 0.0
    %130 = vmatpush1.msra.mxu0 0.0
    %131 = vmatprep.subr.mxu0 0.0
    %132 = vmatpush1.msra.mxu0 0.0
    %133 = vmatprep.subr.mxu0 0.0
    %134 = vmatpush1.msra.mxu0 0.0
    %135 = vmatprep.subr.mxu0 0.0
    %136 = vmatpush1.msra.mxu0 0.0
    %137 = vmatprep.subr.mxu0 0.0
    %138 = vmatpush1.msra.mxu0 0.0
    %139 = vmatprep.subr.mxu0 0.0
    %140 = vmatpush1.msra.mxu0 0.0
    %141 = vmatprep.subr.mxu0 0.0
    %142 = vmatpush1.msra.mxu0 0.0
    %143 = vmatprep.subr.mxu0 0.0
    %144 = vmatpush1.msra.mxu0 0.0
    %145 = vmatprep.subr.mxu0 0.0
    %146 = vmatpush1.msra.mxu0 0.0
    %147 = vmatprep.subr.mxu0 0.0
    %148 = vmatpush1.msra.mxu0 0.0
    %149 = vmatprep.subr.mxu0 0.0
    %150 = vmatpush1.msra.mxu0 0.0
    %151 = vmatprep.subr.mxu0 0.0
    %152 = vmatpush1.msra.mxu0 0.0
    %153 = vmatprep.subr.mxu0 0.0
    %154 = vmatpush1.msra.mxu0 0.0
    %155 = vmatprep.subr.mxu0 0.0
    %156 = vmatpush1.msra.mxu0 0.0
    %157 = vmatprep.subr.mxu0 0.0
    %158 = vmatpush1.msra.mxu0 0.0
    %159 = vmatprep.subr.mxu0 0.0
    %160 = vmatpush1.msra.mxu0 0.0
    %161 = vmatprep.subr.mxu0 0.0
    %162 = vmatpush1.msra.mxu0 0.0
    %163 = vmatprep.subr.mxu0 0.0
    %164 = vmatpush1.msra.mxu0 0.0
    %165 = vmatprep.subr.mxu0 0.0
    %166 = vmatpush1.msra.mxu0 0.0
    %167 = vmatprep.subr.mxu0 0.0
    %168 = vmatpush1.msra.mxu0 0.0
    %169 = vmatprep.subr.mxu0 0.0
    %170 = vmatpush1.msra.mxu0 0.0
    %171 = vmatprep.subr.mxu0 0.0
    %172 = vmatpush1.msra.mxu0 0.0
    %173 = vmatprep.subr.mxu0 0.0
    %174 = vmatpush1.msra.mxu0 0.0
    %175 = vmatprep.subr.mxu0 0.0
    %176 = vmatpush1.msra.mxu0 0.0
    %177 = vmatprep.subr.mxu0 0.0
    %178 = vmatpush1.msra.mxu0 0.0
    %179 = vmatprep.subr.mxu0 0.0
    %180 = vmatpush1.msra.mxu0 0.0
    %181 = vmatprep.subr.mxu0 0.0
    %182 = vmatpush1.msra.mxu0 0.0
    %183 = vmatprep.subr.mxu0 0.0
    %184 = vmatpush1.msra.mxu0 0.0
    %185 = vmatprep.subr.mxu0 0.0
    %186 = vmatpush1.msra.mxu0 0.0
    %187 = vmatprep.subr.mxu0 0.0
    %188 = vmatpush1.msra.mxu0 0.0
    %189 = vmatprep.subr.mxu0 0.0
    %190 = vmatpush1.msra.mxu0 0.0
    %191 = vmatprep.mubr.f32.mxu0 0.0
    %192 = vmatmul.mubr.f32.gmra.mrb[0].mxu0 %v125
    %v193 = vpop.f32.mrb[0].mxu0
    %v194 = vadd.f32 0.0, %v193
    %v195 = vpop.f32.mrb[0].mxu0
    %196 = vdwg.mxu0
    %v197 = vsel %vm124, %v114, 0
    %199 = vmatprep.subr.mxu0 0.0
    %200 = vmatpush1.msra.mxu0 %v36
    %201 = vmatprep.subr.mxu0 0.0
    %202 = vmatpush1.msra.mxu0 0.0
    %203 = vmatprep.subr.mxu0 0.0
    %204 = vmatpush1.msra.mxu0 0.0
    %205 = vmatprep.subr.mxu0 0.0
    %206 = vmatpush1.msra.mxu0 0.0
    %207 = vmatprep.subr.mxu0 0.0
    %208 = vmatpush1.msra.mxu0 0.0
    %209 = vmatprep.subr.mxu0 0.0
    %210 = vmatpush1.msra.mxu0 0.0
    %211 = vmatprep.subr.mxu0 0.0
    %212 = vmatpush1.msra.mxu0 0.0
    %213 = vmatprep.subr.mxu0 0.0
    %214 = vmatpush1.msra.mxu0 0.0
    %215 = vmatprep.subr.mxu0 0.0
    %216 = vmatpush1.msra.mxu0 0.0
    %217 = vmatprep.subr.mxu0 0.0
    %218 = vmatpush1.msra.mxu0 0.0
    %219 = vmatprep.subr.mxu0 0.0
    %220 = vmatpush1.msra.mxu0 0.0
    %221 = vmatprep.subr.mxu0 0.0
    %222 = vmatpush1.msra.mxu0 0.0
    %223 = vmatprep.subr.mxu0 0.0
    %224 = vmatpush1.msra.mxu0 0.0
    %225 = vmatprep.subr.mxu0 0.0
    %226 = vmatpush1.msra.mxu0 0.0
    %227 = vmatprep.subr.mxu0 0.0
    %228 = vmatpush1.msra.mxu0 0.0
    %229 = vmatprep.subr.mxu0 0.0
    %230 = vmatpush1.msra.mxu0 0.0
    %231 = vmatprep.subr.mxu0 0.0
    %232 = vmatpush1.msra.mxu0 0.0
    %233 = vmatprep.subr.mxu0 0.0
    %234 = vmatpush1.msra.mxu0 0.0
    %235 = vmatprep.subr.mxu0 0.0
    %236 = vmatpush1.msra.mxu0 0.0
    %237 = vmatprep.subr.mxu0 0.0
    %238 = vmatpush1.msra.mxu0 0.0
    %239 = vmatprep.subr.mxu0 0.0
    %240 = vmatpush1.msra.mxu0 0.0
    %241 = vmatprep.subr.mxu0 0.0
    %242 = vmatpush1.msra.mxu0 0.0
    %243 = vmatprep.subr.mxu0 0.0
    %244 = vmatpush1.msra.mxu0 0.0
    %245 = vmatprep.subr.mxu0 0.0
    %246 = vmatpush1.msra.mxu0 0.0
    %247 = vmatprep.subr.mxu0 0.0
    %248 = vmatpush1.msra.mxu0 0.0
    %249 = vmatprep.subr.mxu0 0.0
    %250 = vmatpush1.msra.mxu0 0.0
    %251 = vmatprep.subr.mxu0 0.0
    %252 = vmatpush1.msra.mxu0 0.0
    %253 = vmatprep.subr.mxu0 0.0
    %254 = vmatpush1.msra.mxu0 0.0
    %255 = vmatprep.subr.mxu0 0.0
    %256 = vmatpush1.msra.mxu0 0.0
    %257 = vmatprep.subr.mxu0 0.0
    %258 = vmatpush1.msra.mxu0 0.0
    %259 = vmatprep.subr.mxu0 0.0
    %260 = vmatpush1.msra.mxu0 0.0
    %261 = vmatprep.subr.mxu0 0.0
    %262 = vmatpush1.msra.mxu0 0.0
    %263 = vmatprep.mubr.f32.mxu0 0.0
    %264 = vmatmul.mubr.f32.gmra.mrb[0].mxu0 %v197
    %v265 = vpop.f32.mrb[0].mxu0
    %v266 = vadd.f32 0.0, %v265
    %v267 = vpop.f32.mrb[0].mxu0
    %268 = vdwg.mxu0
    %v269 = vld [vmem:[#allocation4] sm:$0x3]
    %271 = vset.pattern.permute.xlu0 0
    %272 = vperm.xlu0 %271, %v76
    %v273 = vpop.permute.xlu0 %272
    %v275 = vmul.f32 %v273, %v269
    %v278 = vrot.slane %v266, 7
    %v279 = vsel %vm66, %v278, %v194
    %v281 = vadd.f32 %v275, %v279
    %vm282 = vcmask 254976
    %283 = vst.msk [vmem:[#allocation4] sm:$0x3] %vm282, %v281
    // Predicated region
    $region18: #{tpu_custom_call.1} parent=1 // pred_check
      %p284 = pneg %p26
    $region19: #{tpu_custom_call.1} parent=1 // pred_check_branch
      %286 = sbr.rel (%p284) target = $region21
    $region20: #{tpu_custom_call.1} parent=1 // pred_region
      %v287 = vld [vmem:[#allocation3] sm:$0x3]
      %v288 = vrcp.pop %v287
      %v289 = vld [vmem:[#allocation4] sm:$0x3]
      %291 = vset.pattern.permute.xlu0 0
      %292 = vperm.xlu0 %291, %v288
      %v293 = vpop.permute.xlu0 %292
      %v295 = vmul.f32 %v289, %v293
      %296 = vst.msk [vmem:[#allocation8] sm:$0x3] %vm282, %v295
    $region21: #{tpu_custom_call.1} parent=1 // pred_fallthru
      _
    // Predicated region
    $region22: #{tpu_custom_call.1} parent=1 // pred_check
      _
    $region23: #{tpu_custom_call.1} parent=1 // pred_check_branch
      %298 = sbr.rel (0) target = $region25
    $region24: #{tpu_custom_call.1} parent=1 // pred_region
      %s300 = ssub.s32 32, 32
      %301 = vsyncadd [#allocation7], %s300
      %s303 = sshll.u32 [#allocation8], 4
      %s304 = int_to_ptr.vmem [resolvable:$true] %s303
      %306 = dma.vmem_to_hbm [thread:$0]  %s304, 32, %s2, [#allocation7]
    $region25: #{tpu_custom_call.1} parent=1 // pred_fallthru
      _
    // Predicated region
    $region26: #{tpu_custom_call.1} parent=1 // pred_check
      _
    $region27: #{tpu_custom_call.1} parent=1 // pred_check_branch
      %308 = sbr.rel (0) target = $region29
    $region28: #{tpu_custom_call.1} parent=1 // pred_region
      %309 = dma.done [#allocation7], 32
    $region29: #{tpu_custom_call.1} parent=1 // pred_fallthru
      _
    %310 = vsyncpa [#allocation6], 1
    %311 = vsyncpa [#allocation7], 1

</llo_original>
